<compile_context>
chip_gen: v7x
topology: tpu7x:2x2x1
jax: 0.10.0
libtpu: 0.0.40
codegen_flags: <defaults>
</compile_context>

<pallas_src>
import jax
import jax.numpy as jnp
from jax.experimental import pallas as pl
from jax.experimental.pallas import tpu as pltpu


def _round_up(x, m):
    return ((x + m - 1) // m) * m


def loglinear_kernel(x_ref, w_ref, b_ref, o_ref):
    # x_ref: (TM, D) VMEM | w_ref: (D, 1) VMEM | b_ref: (1, 1) SMEM
    # o_ref: (1, TM) VMEM  (lane-dense: batch on the lane axis)
    # Canonical (M, K) x (K, 1) matmul: the large x tile is the un-transposed lhs.
    y = jnp.dot(x_ref[...], w_ref[...], preferred_element_type=jnp.float32)  # (TM, 1)
    # Relayout only the small per-row result onto the lane axis (XLU slot).
    y_row = jnp.transpose(y)                                                  # (1, TM)
    o_ref[...] = (y_row + b_ref[0, 0]).astype(o_ref.dtype)


def _vmem_capacity_bytes():
    # Generation-aware VMEM capacity; fall back to the v7x-safe 64 MiB.
    try:
        cap = int(pltpu.get_tpu_info().vmem_capacity_bytes)
        if cap > 0:
            return cap
    except Exception:
        pass
    return 64 * 1024 * 1024


def _pick_batch_tile(B, D, itemsize, x_buf_budget):
    """Rows per batch tile (multiple of 128), sized by bytes of the VMEM block."""
    d_pad = _round_up(max(D, 1), 128)              # lane-padded row size in VMEM
    bytes_per_row = d_pad * itemsize
    tm_budget = max(128, (x_buf_budget // bytes_per_row) // 128 * 128)
    # Aim for ~8 grid steps on large batches so both v7x TensorCores get several
    # steps each (and step counts stay reasonably balanced); never below 128 rows.
    tm_split = max(128, _round_up(pl.cdiv(B, 8), 128))
    return int(min(tm_budget, tm_split))


def loglinear_forward(x, weight, bias):
    """x: (B, D), weight: (1, D), bias: (1,)  ->  (B, 1)   (y = x @ W^T + b)."""
    x = x.astype(jnp.float32)
    B, D = x.shape
    itemsize = jnp.dtype(x.dtype).itemsize

    vmem_cap = _vmem_capacity_bytes()
    vmem_limit = int(vmem_cap * 3 // 4)            # ~96 MiB on 128 MiB parts, ~48 MiB on v7x
    x_buf_budget = vmem_cap // 5                   # per x buffer (Pallas double-buffers it)

    # TODO(synk): for very large embedding dims (f32 D beyond ~48K) even a single
    # double-buffered (128, D) tile exceeds VMEM; that regime needs a reduction
    # grid axis over D with an f32 accumulator.
    TM = _pick_batch_tile(B, D, itemsize, x_buf_budget)
    B_pad = _round_up(B, TM)
    if B_pad != B:
        x = jnp.pad(x, ((0, B_pad - B), (0, 0)))

    w_col = weight.reshape(D, 1).astype(jnp.float32)     # pre-transposed weight column
    bias2d = bias.reshape(1, 1).astype(jnp.float32)

    grid = (B_pad // TM,)

    out = pl.pallas_call(
        loglinear_kernel,
        out_shape=jax.ShapeDtypeStruct((1, B_pad), jnp.float32),
        grid=grid,
        in_specs=[
            pl.BlockSpec((TM, D), lambda i: (i, 0)),               # x batch tile
            pl.BlockSpec((D, 1), lambda i: (0, 0)),                # weight column (resident)
            pl.BlockSpec(memory_space=pltpu.MemorySpace.SMEM),     # bias scalar
        ],
        out_specs=pl.BlockSpec((1, TM), lambda i: (0, i)),         # lane-dense output row
        compiler_params=pltpu.CompilerParams(
            dimension_semantics=("parallel",),
            vmem_limit_bytes=vmem_limit,
        ),
        cost_estimate=pl.CostEstimate(
            flops=2 * B_pad * D,
            transcendentals=0,
            bytes_accessed=(B_pad * D + D + B_pad) * itemsize,
        ),
    )(x, w_col, bias2d)

    # (1, B_pad) -> (B, 1): free layout plumbing in the wrapper.
    return out[0, :B].reshape(B, 1)


if __name__ == "__main__":
    key = jax.random.PRNGKey(0)
    kx, kw, kb, kx2 = jax.random.split(key, 4)

    # Small shapes consistent with the module: batch=8, embedding_dim=32.
    batch, embedding_dim = 8, 32
    bound = 1.0 / jnp.sqrt(jnp.float32(embedding_dim))
    weight = jax.random.uniform(kw, (1, embedding_dim), jnp.float32, -bound, bound)
    bias = jax.random.uniform(kb, (1,), jnp.float32, -bound, bound)
    x = jax.random.normal(kx, (batch, embedding_dim), jnp.float32)

    out = jax.block_until_ready(loglinear_forward(x, weight, bias))
    ref = x @ weight.T + bias
    assert out.shape == (batch, 1)
    assert jnp.allclose(out, ref, atol=1e-5, rtol=1e-5)

    # Second check: batch not a tile multiple, odd embedding dim -> exercises
    # padding, a multi-step grid, and the lane-dense output relayout.
    batch2, dim2 = 4097, 50
    bound2 = 1.0 / jnp.sqrt(jnp.float32(dim2))
    w2 = jax.random.uniform(kw, (1, dim2), jnp.float32, -bound2, bound2)
    b2 = jax.random.uniform(kb, (1,), jnp.float32, -bound2, bound2)
    x2 = jax.random.normal(kx2, (batch2, dim2), jnp.float32)
    out2 = jax.block_until_ready(loglinear_forward(x2, w2, b2))
    ref2 = x2 @ w2.T + b2
    assert out2.shape == (batch2, 1)
    assert jnp.allclose(out2, ref2, atol=1e-4, rtol=1e-5)

    print("KERNEL_OK")
</pallas_src>

<mosaic_0001>
module attributes {stable_mosaic.version = 11 : i64} {
  func.func @loglinear_kernel(%arg0: i32, %arg1: memref<128x32xf32, #tpu.memory_space<vmem>>, %arg2: memref<32x1xf32, #tpu.memory_space<vmem>>, %arg3: memref<1x1xf32, #tpu.memory_space<smem>>, %arg4: memref<1x128xf32, #tpu.memory_space<vmem>>) attributes {dimension_semantics = [#tpu.dimension_semantics<parallel>], iteration_bounds = array<i64: 1>, scalar_prefetch = 0 : i64, scratch_operands = 0 : i64, tpu.core_type = #tpu.core_type<tc>, window_params = [{transform_indices = @transform_0, window_bounds = array<i64: 128, 32>}, {pipeline_mode = #tpu.pipeline_mode<synchronous>, transform_indices = @transform_1, window_bounds = array<i64: 32, 1>}, {transform_indices = @transform_2, window_bounds = array<i64: 1, 1>}, {transform_indices = @transform_3, window_bounds = array<i64: 1, 128>}]} {
    %c0 = arith.constant 0 : index
    %c0_0 = arith.constant 0 : index
    %0 = vector.load %arg1[%c0, %c0_0] : memref<128x32xf32, #tpu.memory_space<vmem>>, vector<128x32xf32>
    %c0_1 = arith.constant 0 : index
    %c0_2 = arith.constant 0 : index
    %1 = vector.load %arg2[%c0_1, %c0_2] : memref<32x1xf32, #tpu.memory_space<vmem>>, vector<32x1xf32>
    %cst = arith.constant dense<0.000000e+00> : vector<128x1xf32>
    %2 = tpu.matmul %0, %1, %cst {dimension_numbers = #tpu.dot_dimension_numbers<[1], [0], [0], [1], [0, 0, 1, 1], [], []>} : vector<128x32xf32>, vector<32x1xf32>, vector<128x1xf32> -> vector<128x1xf32>
    %3 = tpu.transpose %2, [1, 0] : vector<128x1xf32> -> vector<1x128xf32>
    %c0_3 = arith.constant 0 : index
    %c0_4 = arith.constant 0 : index
    %4 = memref.load %arg3[%c0_3, %c0_4] : memref<1x1xf32, #tpu.memory_space<smem>>
    %5 = vector.broadcast %4 : f32 to vector<1x128xf32>
    %6 = arith.addf %3, %5 : vector<1x128xf32>
    %c0_5 = arith.constant 0 : index
    %c0_6 = arith.constant 0 : index
    %7 = vector.load %arg4[%c0_5, %c0_6] : memref<1x128xf32, #tpu.memory_space<vmem>>, vector<1x128xf32>
    tpu.vector_store %arg4[%c0_5, %c0_6], %6 {strides = array<i32>} : memref<1x128xf32, #tpu.memory_space<vmem>>, vector<1x128xf32>,
    return
  }
  func.func @transform_0(%arg0: i32) -> (i32, i32) {
    %c0_i32 = arith.constant 0 : i32
    %c0_i32_0 = arith.constant 0 : i32
    return %arg0, %c0_i32 : i32, i32
  }
  func.func @transform_1(%arg0: i32) -> (i32, i32) {
    %c0_i32 = arith.constant 0 : i32
    %c0_i32_0 = arith.constant 0 : i32
    %c0_i32_1 = arith.constant 0 : i32
    return %c0_i32, %c0_i32_0 : i32, i32
  }
  func.func @transform_2(%arg0: i32) -> (i32, i32) {
    %c0_i32 = arith.constant 0 : i32
    %c0_i32_0 = arith.constant 0 : i32
    %c0_i32_1 = arith.constant 0 : i32
    return %c0_i32, %c0_i32_0 : i32, i32
  }
  func.func @transform_3(%arg0: i32) -> (i32, i32) {
    %c0_i32 = arith.constant 0 : i32
    %c0_i32_0 = arith.constant 0 : i32
    return %c0_i32, %arg0 : i32, i32
  }
}

</mosaic_0001>

<llo_original>
// kernel: tpu_custom_call.1
$region0: #{tpu_custom_call.1}
  #allocation0 [shape = 'u32[]', space=smem, size = 0x4, offset = 0x4, fixed_abs, tag = 'smem constant byte address 0x4 - core index']
  #allocation1 [shape = 'u32[144,128]{1,0:T(1,128)}', space=vmem, size = 0x12000, scoped, tag = 'internal scratch']
  #allocation2 [shape = 'f32[1,1]{1,0:T(1,128)S(6)}', space=smem, size = 0x200, scoped, tag = 'scoped memory for tpu_custom_call.1']
  %s0 = inlined_call_operand.vmem [shape: f32[128,32], index: 0, kind: input, shape index: {}]
  %s1 = inlined_call_operand.vmem [shape: f32[32,1], index: 1, kind: input, shape index: {}]
  %s2 = inlined_call_operand.<no memory space> [shape: f32[1,1], index: 2, kind: input, shape index: {}]
  %s3 = inlined_call_operand.hbm [shape: f32[1,128], index: 3, kind: output, shape index: {}]
  %s4 = sld [smem:[#allocation0]]
  $region22: #{tpu_custom_call.1} parent=0
    _
  %s6 = ssub.s32 1, %s4
  %s7 = scalar_select 0, %s6, %s4
  %8 = sst [smem:[#allocation2]] %s2
  $region1: #{tpu_custom_call.1} parent=0
    #allocation3 [shape = 'u8[512]{0}', space=vmem, size = 0x400, scoped, tag = 'output window, operand 0, single buffered']
    #allocation4 [shape = 's32[1]{0}', space=sflag, size = 0x4, scoped, tag = 'scoped memory for tpu_custom_call.1']
    %9 = vsyncpa [#allocation4], 0
    // Predicated region
    $region2: #{tpu_custom_call.1} parent=1 // pred_check
      _
    $region3: #{tpu_custom_call.1} parent=1 // pred_check_branch
      %11 = sbr.rel (0) target = $region5
    $region4: #{tpu_custom_call.1} parent=1 // pred_region
      _
    $region5: #{tpu_custom_call.1} parent=1 // pred_fallthru
      _
    // Predicated region
    $region6: #{tpu_custom_call.1} parent=1 // pred_check
      _
    $region7: #{tpu_custom_call.1} parent=1 // pred_check_branch
      %13 = sbr.rel (0) target = $region9
    $region8: #{tpu_custom_call.1} parent=1 // pred_region
      _
    $region9: #{tpu_custom_call.1} parent=1 // pred_fallthru
      _
    // Predicated region
    $region10: #{tpu_custom_call.1} parent=1 // pred_check
      _
    $region11: #{tpu_custom_call.1} parent=1 // pred_check_branch
      %15 = sbr.rel (0) target = $region13
    $region12: #{tpu_custom_call.1} parent=1 // pred_region
      _
    $region13: #{tpu_custom_call.1} parent=1 // pred_fallthru
      _
    %v16 = vld [vmem:[%s0] sm:$0xff]
    %v17 = vld [vmem:[%s0 + $0x8] sm:$0xff]
    %v18 = vld [vmem:[%s0 + $0x10] sm:$0xff]
    %v19 = vld [vmem:[%s0 + $0x18] sm:$0xff]
    %v20 = vld [vmem:[%s0 + $0x20] sm:$0xff]
    %v21 = vld [vmem:[%s0 + $0x28] sm:$0xff]
    %v22 = vld [vmem:[%s0 + $0x30] sm:$0xff]
    %v23 = vld [vmem:[%s0 + $0x38] sm:$0xff]
    %v24 = vld [vmem:[%s0 + $0x40] sm:$0xff]
    %v25 = vld [vmem:[%s0 + $0x48] sm:$0xff]
    %v26 = vld [vmem:[%s0 + $0x50] sm:$0xff]
    %v27 = vld [vmem:[%s0 + $0x58] sm:$0xff]
    %v28 = vld [vmem:[%s0 + $0x60] sm:$0xff]
    %v29 = vld [vmem:[%s0 + $0x68] sm:$0xff]
    %v30 = vld [vmem:[%s0 + $0x70] sm:$0xff]
    %v31 = vld [vmem:[%s0 + $0x78] sm:$0xff]
    %v32 = vld [vmem:[%s1] sm:$0xff]
    %v33 = vld [vmem:[%s1 + $0x8] sm:$0xff]
    %v34 = vld [vmem:[%s1 + $0x10] sm:$0xff]
    %v35 = vld [vmem:[%s1 + $0x18] sm:$0xff]
    %vm36 = vcmask 261120
    %v38 = vsel %vm36, %v16, 0
    %v41 = vsel %vm36, %v17, 0
    %v44 = vsel %vm36, %v18, 0
    %v47 = vsel %vm36, %v19, 0
    %v50 = vsel %vm36, %v20, 0
    %v53 = vsel %vm36, %v21, 0
    %v56 = vsel %vm36, %v22, 0
    %v59 = vsel %vm36, %v23, 0
    %v62 = vsel %vm36, %v24, 0
    %v65 = vsel %vm36, %v25, 0
    %v68 = vsel %vm36, %v26, 0
    %v71 = vsel %vm36, %v27, 0
    %v74 = vsel %vm36, %v28, 0
    %v77 = vsel %vm36, %v29, 0
    %v80 = vsel %vm36, %v30, 0
    %v83 = vsel %vm36, %v31, 0
    %85 = vmatprep.subr.mxu0 0.0
    %86 = vmatpush1.msra.mxu0 %v32
    %87 = vmatprep.subr.mxu0 0.0
    %88 = vmatpush1.msra.mxu0 %v33
    %89 = vmatprep.subr.mxu0 0.0
    %90 = vmatpush1.msra.mxu0 %v34
    %91 = vmatprep.subr.mxu0 0.0
    %92 = vmatpush1.msra.mxu0 %v35
    %93 = vmatprep.subr.mxu0 0.0
    %94 = vmatpush1.msra.mxu0 0.0
    %95 = vmatprep.subr.mxu0 0.0
    %96 = vmatpush1.msra.mxu0 0.0
    %97 = vmatprep.subr.mxu0 0.0
    %98 = vmatpush1.msra.mxu0 0.0
    %99 = vmatprep.subr.mxu0 0.0
    %100 = vmatpush1.msra.mxu0 0.0
    %101 = vmatprep.subr.mxu0 0.0
    %102 = vmatpush1.msra.mxu0 0.0
    %103 = vmatprep.subr.mxu0 0.0
    %104 = vmatpush1.msra.mxu0 0.0
    %105 = vmatprep.subr.mxu0 0.0
    %106 = vmatpush1.msra.mxu0 0.0
    %107 = vmatprep.subr.mxu0 0.0
    %108 = vmatpush1.msra.mxu0 0.0
    %109 = vmatprep.subr.mxu0 0.0
    %110 = vmatpush1.msra.mxu0 0.0
    %111 = vmatprep.subr.mxu0 0.0
    %112 = vmatpush1.msra.mxu0 0.0
    %113 = vmatprep.subr.mxu0 0.0
    %114 = vmatpush1.msra.mxu0 0.0
    %115 = vmatprep.subr.mxu0 0.0
    %116 = vmatpush1.msra.mxu0 0.0
    %117 = vmatprep.subr.mxu0 0.0
    %118 = vmatpush1.msra.mxu0 0.0
    %119 = vmatprep.subr.mxu0 0.0
    %120 = vmatpush1.msra.mxu0 0.0
    %121 = vmatprep.subr.mxu0 0.0
    %122 = vmatpush1.msra.mxu0 0.0
    %123 = vmatprep.subr.mxu0 0.0
    %124 = vmatpush1.msra.mxu0 0.0
    %125 = vmatprep.subr.mxu0 0.0
    %126 = vmatpush1.msra.mxu0 0.0
    %127 = vmatprep.subr.mxu0 0.0
    %128 = vmatpush1.msra.mxu0 0.0
    %129 = vmatprep.subr.mxu0 0.0
    %130 = vmatpush1.msra.mxu0 0.0
    %131 = vmatprep.subr.mxu0 0.0
    %132 = vmatpush1.msra.mxu0 0.0
    %133 = vmatprep.subr.mxu0 0.0
    %134 = vmatpush1.msra.mxu0 0.0
    %135 = vmatprep.subr.mxu0 0.0
    %136 = vmatpush1.msra.mxu0 0.0
    %137 = vmatprep.subr.mxu0 0.0
    %138 = vmatpush1.msra.mxu0 0.0
    %139 = vmatprep.subr.mxu0 0.0
    %140 = vmatpush1.msra.mxu0 0.0
    %141 = vmatprep.subr.mxu0 0.0
    %142 = vmatpush1.msra.mxu0 0.0
    %143 = vmatprep.subr.mxu0 0.0
    %144 = vmatpush1.msra.mxu0 0.0
    %145 = vmatprep.subr.mxu0 0.0
    %146 = vmatpush1.msra.mxu0 0.0
    %147 = vmatprep.subr.mxu0 0.0
    %148 = vmatpush1.msra.mxu0 0.0
    %149 = vmatprep.mubr.f32.mxu0 0.0
    %150 = vmatmul.mubr.f32.gmra.mrb[0].mxu0 %v38
    %v151 = vpop.f32.mrb[0].mxu0
    %v152 = vadd.f32 0.0, %v151
    %v153 = vpop.f32.mrb[0].mxu0
    %154 = vmatprep.mubr.f32.mxu0 0.0
    %155 = vmatmul.mubr.f32.gmra.mrb[0].mxu0 %v41
    %v156 = vpop.f32.mrb[0].mxu0
    %v157 = vadd.f32 0.0, %v156
    %v158 = vpop.f32.mrb[0].mxu0
    %159 = vmatprep.mubr.f32.mxu0 0.0
    %160 = vmatmul.mubr.f32.gmra.mrb[0].mxu0 %v44
    %v161 = vpop.f32.mrb[0].mxu0
    %v162 = vadd.f32 0.0, %v161
    %v163 = vpop.f32.mrb[0].mxu0
    %164 = vmatprep.mubr.f32.mxu0 0.0
    %165 = vmatmul.mubr.f32.gmra.mrb[0].mxu0 %v47
    %v166 = vpop.f32.mrb[0].mxu0
    %v167 = vadd.f32 0.0, %v166
    %v168 = vpop.f32.mrb[0].mxu0
    %169 = vmatprep.mubr.f32.mxu0 0.0
    %170 = vmatmul.mubr.f32.gmra.mrb[0].mxu0 %v50
    %v171 = vpop.f32.mrb[0].mxu0
    %v172 = vadd.f32 0.0, %v171
    %v173 = vpop.f32.mrb[0].mxu0
    %174 = vmatprep.mubr.f32.mxu0 0.0
    %175 = vmatmul.mubr.f32.gmra.mrb[0].mxu0 %v53
    %v176 = vpop.f32.mrb[0].mxu0
    %v177 = vadd.f32 0.0, %v176
    %v178 = vpop.f32.mrb[0].mxu0
    %179 = vmatprep.mubr.f32.mxu0 0.0
    %180 = vmatmul.mubr.f32.gmra.mrb[0].mxu0 %v56
    %v181 = vpop.f32.mrb[0].mxu0
    %v182 = vadd.f32 0.0, %v181
    %v183 = vpop.f32.mrb[0].mxu0
    %184 = vmatprep.mubr.f32.mxu0 0.0
    %185 = vmatmul.mubr.f32.gmra.mrb[0].mxu0 %v59
    %v186 = vpop.f32.mrb[0].mxu0
    %v187 = vadd.f32 0.0, %v186
    %v188 = vpop.f32.mrb[0].mxu0
    %189 = vmatprep.mubr.f32.mxu0 0.0
    %190 = vmatmul.mubr.f32.gmra.mrb[0].mxu0 %v62
    %v191 = vpop.f32.mrb[0].mxu0
    %v192 = vadd.f32 0.0, %v191
    %v193 = vpop.f32.mrb[0].mxu0
    %194 = vmatprep.mubr.f32.mxu0 0.0
    %195 = vmatmul.mubr.f32.gmra.mrb[0].mxu0 %v65
    %v196 = vpop.f32.mrb[0].mxu0
    %v197 = vadd.f32 0.0, %v196
    %v198 = vpop.f32.mrb[0].mxu0
    %199 = vmatprep.mubr.f32.mxu0 0.0
    %200 = vmatmul.mubr.f32.gmra.mrb[0].mxu0 %v68
    %v201 = vpop.f32.mrb[0].mxu0
    %v202 = vadd.f32 0.0, %v201
    %v203 = vpop.f32.mrb[0].mxu0
    %204 = vmatprep.mubr.f32.mxu0 0.0
    %205 = vmatmul.mubr.f32.gmra.mrb[0].mxu0 %v71
    %v206 = vpop.f32.mrb[0].mxu0
    %v207 = vadd.f32 0.0, %v206
    %v208 = vpop.f32.mrb[0].mxu0
    %209 = vmatprep.mubr.f32.mxu0 0.0
    %210 = vmatmul.mubr.f32.gmra.mrb[0].mxu0 %v74
    %v211 = vpop.f32.mrb[0].mxu0
    %v212 = vadd.f32 0.0, %v211
    %v213 = vpop.f32.mrb[0].mxu0
    %214 = vmatprep.mubr.f32.mxu0 0.0
    %215 = vmatmul.mubr.f32.gmra.mrb[0].mxu0 %v77
    %v216 = vpop.f32.mrb[0].mxu0
    %v217 = vadd.f32 0.0, %v216
    %v218 = vpop.f32.mrb[0].mxu0
    %219 = vmatprep.mubr.f32.mxu0 0.0
    %220 = vmatmul.mubr.f32.gmra.mrb[0].mxu0 %v80
    %v221 = vpop.f32.mrb[0].mxu0
    %v222 = vadd.f32 0.0, %v221
    %v223 = vpop.f32.mrb[0].mxu0
    %224 = vmatprep.mubr.f32.mxu0 0.0
    %225 = vmatmul.mubr.f32.gmra.mrb[0].mxu0 %v83
    %v226 = vpop.f32.mrb[0].mxu0
    %v227 = vadd.f32 0.0, %v226
    %v228 = vpop.f32.mrb[0].mxu0
    %229 = vdwg.mxu0
    %230 = vxpose.xlu0.b32.start [1/16] %v152, 128
    %231 = vxpose.xlu0.b32.cont [2/16] %v157, 128
    %232 = vxpose.xlu0.b32.cont [3/16] %v162, 128
    %233 = vxpose.xlu0.b32.cont [4/16] %v167, 128
    %234 = vxpose.xlu0.b32.cont [5/16] %v172, 128
    %235 = vxpose.xlu0.b32.cont [6/16] %v177, 128
    %236 = vxpose.xlu0.b32.cont [7/16] %v182, 128
    %237 = vxpose.xlu0.b32.cont [8/16] %v187, 128
    %238 = vxpose.xlu0.b32.cont [9/16] %v192, 128
    %239 = vxpose.xlu0.b32.cont [10/16] %v197, 128
    %240 = vxpose.xlu0.b32.cont [11/16] %v202, 128
    %241 = vxpose.xlu0.b32.cont [12/16] %v207, 128
    %242 = vxpose.xlu0.b32.cont [13/16] %v212, 128
    %243 = vxpose.xlu0.b32.cont [14/16] %v217, 128
    %244 = vxpose.xlu0.b32.cont [15/16] %v222, 128
    %245 = vxpose.xlu0.b32.end [16/16] %v227, 128
    %v246 = vpop.trf.xlu0
    %v247 = vpop.trf.xlu0
    %v248 = vpop.trf.xlu0
    %v249 = vpop.trf.xlu0
    %v250 = vpop.trf.xlu0
    %v251 = vpop.trf.xlu0
    %v252 = vpop.trf.xlu0
    %v253 = vpop.trf.xlu0
    %v254 = vpop.trf.xlu0
    %v255 = vpop.trf.xlu0
    %v256 = vpop.trf.xlu0
    %v257 = vpop.trf.xlu0
    %v258 = vpop.trf.xlu0
    %v259 = vpop.trf.xlu0
    %v260 = vpop.trf.xlu0
    %v261 = vpop.trf.xlu0
    %s262 = sld [smem:[#allocation2]]
    %v263 = vstv %s262
    %v264 = vadd.f32 %v246, %v263
    %265 = vst [vmem:[#allocation3] sm:$0x1] %v264
    // Predicated region
    $region14: #{tpu_custom_call.1} parent=1 // pred_check
      _
    $region15: #{tpu_custom_call.1} parent=1 // pred_check_branch
      %267 = sbr.rel (0) target = $region17
    $region16: #{tpu_custom_call.1} parent=1 // pred_region
      %s269 = ssub.s32 16, 16
      %270 = vsyncadd [#allocation4], %s269
      %s272 = sshll.u32 [#allocation3], 4
      %s273 = int_to_ptr.vmem [resolvable:$true] %s272
      %275 = dma.vmem_to_hbm [thread:$0]  %s273, 16, %s3, [#allocation4]
    $region17: #{tpu_custom_call.1} parent=1 // pred_fallthru
      _
    // Predicated region
    $region18: #{tpu_custom_call.1} parent=1 // pred_check
      _
    $region19: #{tpu_custom_call.1} parent=1 // pred_check_branch
      %277 = sbr.rel (0) target = $region21
    $region20: #{tpu_custom_call.1} parent=1 // pred_region
      %278 = dma.done [#allocation4], 16
    $region21: #{tpu_custom_call.1} parent=1 // pred_fallthru
      _
    %279 = vsyncpa [#allocation4], 1

</llo_original>
